<compile_context>
chip_gen: v7x
topology: tpu7x:2x2x1
jax: 0.10.0
libtpu: 0.0.40
codegen_flags: <defaults>
</compile_context>

<pallas_src>
import functools

import jax
import jax.numpy as jnp
from jax.experimental import pallas as pl
from jax.experimental.pallas import tpu as pltpu


def _round_up(x, m):
    return ((x + m - 1) // m) * m


def _pick_tile_n(n, c, itemsize, align, num_cores):
    # Budget against the lane-padded class dim: C < 128 still occupies 128
    # lanes per row in VMEM.  ~4 MiB per pipelined logits buffer; capped at
    # 8192 rows so the in-kernel f32 temporaries (~3x tile in f32) keep total
    # scoped VMEM around ~20 MiB, well inside 48 MiB on every generation.
    c_pad = _round_up(c, 128)
    budget_bytes = 4 * 1024 * 1024
    t = budget_bytes // (c_pad * itemsize)
    t = max(align, (t // align) * align)
    t = min(t, 8192)
    # No point in tiles bigger than each core's share of the rows.
    per_core = _round_up(pl.cdiv(n, num_cores), align)
    t = min(t, max(per_core, align))
    return max(t, align)


def _focal_loss_kernel(logits_ref, targets_ref, out_ref, *, gamma, n_valid,
                       tile_n, tiles_per_core):
    ci = pl.program_id(0)   # core (parallel) axis
    ti = pl.program_id(1)   # tile (arbitrary / reduction) axis

    @pl.when(ti == 0)
    def _init():
        out_ref[...] = jnp.zeros_like(out_ref)

    x = logits_ref[...].astype(jnp.float32)            # (tile_n, C)
    t = targets_ref[...]                               # (tile_n, 1) int32

    # Numerically-stable log-sum-exp (one EUP exp per loaded element).
    m = jnp.max(x, axis=-1, keepdims=True)             # (tile_n, 1)
    e = jnp.exp(x - m)                                  # (tile_n, C)
    sumexp = jnp.sum(e, axis=-1, keepdims=True)         # (tile_n, 1)

    # Target-class gather via a single select (no float one-hot materialized).
    cls = jax.lax.broadcasted_iota(jnp.int32, x.shape, 1)
    logit_t = jnp.sum(jnp.where(cls == t, x, 0.0), axis=-1, keepdims=True)

    # Per-sample cross entropy (clamped >= 0 against f32 rounding) and
    # pt = exp(-ce): exact, and avoids the second cross-lane sum + reciprocal.
    ce = jnp.maximum(jnp.log(sumexp) + m - logit_t, 0.0)          # (tile_n, 1)
    pt = jnp.exp(-ce)                                              # (tile_n, 1)
    omp = jnp.maximum(1.0 - pt, 0.0)

    g = float(gamma)
    if g == int(g) and 0 <= int(g) <= 4:
        # Integer gamma: cheap VPU multiplies, no log/exp, no NaN hazard.
        w = jnp.ones_like(omp)
        for _ in range(int(g)):
            w = w * omp
    else:
        w = omp ** g

    focal = w * ce                                                 # (tile_n, 1)

    # Mask rows beyond N (boundary blocks read unspecified tail data; the
    # select keeps any NaN/Inf there from propagating into the sum).
    logical_tile = ci * tiles_per_core + ti
    row = jax.lax.broadcasted_iota(jnp.int32, focal.shape, 0) + logical_tile * tile_n
    focal = jnp.where(row < n_valid, focal, 0.0)

    # Per-core partial sum, broadcast across the resident (1, 8, 128) tile.
    out_ref[...] += jnp.sum(focal)


def focal_loss(logits, targets, *, gamma=2.0, reduction="mean", tile_n=None,
               num_cores=2):
    """Focal loss matching the PyTorch FocalLoss module (alpha=None)."""
    assert reduction in ("mean", "sum"), "only 'mean'/'sum' reductions wired up"
    n, c = logits.shape

    itemsize = jnp.dtype(logits.dtype).itemsize
    align = 16 if itemsize < 4 else 8   # sublane packing for 16-bit dtypes

    if tile_n is None:
        tile_n = _pick_tile_n(n, c, itemsize, align, num_cores)
    assert tile_n % align == 0, f"tile_n must be a multiple of {align}"

    nblocks = pl.cdiv(n, tile_n)                 # total real row tiles
    ncores = max(1, min(num_cores, nblocks))     # don't split tiny problems
    tpc = pl.cdiv(nblocks, ncores)               # tiles per core

    targets2d = targets.astype(jnp.int32).reshape(n, 1)

    kernel = functools.partial(
        _focal_loss_kernel,
        gamma=float(gamma),
        n_valid=int(n),
        tile_n=int(tile_n),
        tiles_per_core=int(tpc),
    )

    def tile_map(ci, ti):
        # Clamp so a trailing core with fewer real tiles never produces a
        # fully out-of-bounds block index (its rows are masked in-kernel).
        return (jnp.minimum(ci * tpc + ti, nblocks - 1), 0)

    out = pl.pallas_call(
        kernel,
        out_shape=jax.ShapeDtypeStruct((ncores, 8, 128), jnp.float32),
        grid=(ncores, tpc),
        in_specs=[
            pl.BlockSpec((tile_n, c), tile_map),
            pl.BlockSpec((tile_n, 1), tile_map),
        ],
        # One resident (8,128) f32 accumulator tile per core.
        out_specs=pl.BlockSpec((1, 8, 128), lambda ci, ti: (ci, 0, 0)),
        compiler_params=pltpu.CompilerParams(
            dimension_semantics=("parallel", "arbitrary"),
            # Safe ceiling on v7x (64 MiB/TC) and below; tiles are sized so
            # actual usage stays around ~20 MiB.
            vmem_limit_bytes=48 * 1024 * 1024,
        ),
    )(logits, targets2d)

    total = jnp.sum(out[:, 0, 0])
    if reduction == "mean":
        total = total / jnp.float32(n)
    return total


if __name__ == "__main__":
    key = jax.random.PRNGKey(0)
    k1, k2, k3, k4, k5, k6 = jax.random.split(key, 6)

    def ref_focal(logits, targets, gamma=2.0, reduction="mean"):
        logits = logits.astype(jnp.float32)
        logp = jax.nn.log_softmax(logits, axis=-1)
        ce = -jnp.take_along_axis(logp, targets[:, None].astype(jnp.int32),
                                  axis=-1)[:, 0]
        pt = jnp.exp(-ce)
        fl = (1.0 - pt) ** gamma * ce
        return jnp.mean(fl) if reduction == "mean" else jnp.sum(fl)

    # Case 1: small classification problem (batch=8, num_classes=32), one tile.
    N1, C1 = 8, 32
    logits1 = jax.random.normal(k1, (N1, C1), dtype=jnp.float32)
    targets1 = jax.random.randint(k2, (N1,), 0, C1, dtype=jnp.int32)
    loss1 = focal_loss(logits1, targets1, gamma=2.0)
    jax.block_until_ready(loss1)
    r1 = ref_focal(logits1, targets1, gamma=2.0)
    assert jnp.allclose(loss1, r1, rtol=2e-3, atol=2e-3), (loss1, r1)

    # Case 2: multi-tile grid, 2-core split, masked tail (batch=50 not a tile
    # multiple) — no wrapper-side padding of logits.
    N2, C2 = 50, 32
    logits2 = jax.random.normal(k3, (N2, C2), dtype=jnp.float32)
    targets2 = jax.random.randint(k4, (N2,), 0, C2, dtype=jnp.int32)
    loss2 = focal_loss(logits2, targets2, gamma=2.0, tile_n=16)
    jax.block_until_ready(loss2)
    r2 = ref_focal(logits2, targets2, gamma=2.0)
    assert jnp.allclose(loss2, r2, rtol=2e-3, atol=2e-3), (loss2, r2)

    # Case 3: bf16 ingestion, non-128-multiple class count, non-integer gamma,
    # 'sum' reduction.
    N3, C3 = 64, 10
    logits3 = jax.random.normal(k5, (N3, C3), dtype=jnp.float32).astype(jnp.bfloat16)
    targets3 = jax.random.randint(k6, (N3,), 0, C3, dtype=jnp.int32)
    loss3 = focal_loss(logits3, targets3, gamma=1.5, reduction="sum")
    jax.block_until_ready(loss3)
    r3 = ref_focal(logits3, targets3, gamma=1.5, reduction="sum")
    assert jnp.allclose(loss3, r3, rtol=1e-2, atol=1e-2), (loss3, r3)

    print("KERNEL_OK")
</pallas_src>

<mosaic_0001>
module attributes {stable_mosaic.version = 11 : i64} {
  func.func @_focal_loss_kernel(%arg0: i32, %arg1: i32, %arg2: memref<8x32xf32, #tpu.memory_space<vmem>>, %arg3: memref<8x1xi32, #tpu.memory_space<vmem>>, %arg4: memref<1x8x128xf32, #tpu.memory_space<vmem>>) attributes {dimension_semantics = [#tpu.dimension_semantics<parallel>, #tpu.dimension_semantics<arbitrary>], iteration_bounds = array<i64: 1, 1>, scalar_prefetch = 0 : i64, scratch_operands = 0 : i64, tpu.core_type = #tpu.core_type<tc>, window_params = [{transform_indices = @transform_0, window_bounds = array<i64: 8, 32>}, {transform_indices = @transform_1, window_bounds = array<i64: 8, 1>}, {transform_indices = @transform_2, window_bounds = array<i64: 1, 8, 128>}]} {
    %c0_i32 = arith.constant 0 : i32
    %0 = arith.cmpi eq, %arg1, %c0_i32 : i32
    %1 = arith.extui %0 : i1 to i32
    %c0_i32_0 = arith.constant 0 : i32
    %2 = arith.cmpi ne, %1, %c0_i32_0 : i32
    scf.if %2 {
      %cst_21 = arith.constant 0.000000e+00 : f32
      %53 = vector.broadcast %cst_21 : f32 to vector<1x8x128xf32>
      %c0_22 = arith.constant 0 : index
      %c0_23 = arith.constant 0 : index
      %c0_24 = arith.constant 0 : index
      %54 = vector.load %arg4[%c0_22, %c0_23, %c0_24] : memref<1x8x128xf32, #tpu.memory_space<vmem>>, vector<1x8x128xf32>
      tpu.vector_store %arg4[%c0_22, %c0_23, %c0_24], %53 {strides = array<i32>} : memref<1x8x128xf32, #tpu.memory_space<vmem>>, vector<1x8x128xf32>,
    } else {
    }
    %c0 = arith.constant 0 : index
    %c0_1 = arith.constant 0 : index
    %3 = vector.load %arg2[%c0, %c0_1] : memref<8x32xf32, #tpu.memory_space<vmem>>, vector<8x32xf32>
    %c0_2 = arith.constant 0 : index
    %c0_3 = arith.constant 0 : index
    %4 = vector.load %arg3[%c0_2, %c0_3] : memref<8x1xi32, #tpu.memory_space<vmem>>, vector<8x1xi32>
    %cst = arith.constant dense<0xFF800000> : vector<8xf32>
    %5 = vector.multi_reduction <maximumf>, %3, %cst [1] : vector<8x32xf32> to vector<8xf32>
    %6 = vector.shape_cast %5 : vector<8xf32> to vector<8x1xf32>
    %7 = vector.broadcast %6 : vector<8x1xf32> to vector<8x32xf32>
    %8 = arith.subf %3, %7 : vector<8x32xf32>
    %9 = math.exp %8 : vector<8x32xf32>
    %cst_4 = arith.constant dense<0.000000e+00> : vector<8xf32>
    %10 = vector.multi_reduction <add>, %9, %cst_4 [1] : vector<8x32xf32> to vector<8xf32>
    %11 = vector.shape_cast %10 : vector<8xf32> to vector<8x1xf32>
    %12 = tpu.iota {dimensions = array<i32: 1>} : vector<8x32xi32>
    %13 = vector.broadcast %4 : vector<8x1xi32> to vector<8x32xi32>
    %14 = arith.cmpi eq, %12, %13 : vector<8x32xi32>
    %cst_5 = arith.constant 0.000000e+00 : f32
    %15 = vector.broadcast %cst_5 : f32 to vector<8x32xf32>
    %16 = arith.select %14, %3, %15 : vector<8x32xi1>, vector<8x32xf32>
    %cst_6 = arith.constant dense<0.000000e+00> : vector<8xf32>
    %17 = vector.multi_reduction <add>, %16, %cst_6 [1] : vector<8x32xf32> to vector<8xf32>
    %18 = vector.shape_cast %17 : vector<8xf32> to vector<8x1xf32>
    %19 = math.log %11 : vector<8x1xf32>
    %20 = arith.addf %19, %6 : vector<8x1xf32>
    %21 = arith.subf %20, %18 : vector<8x1xf32>
    %cst_7 = arith.constant 0.000000e+00 : f32
    %22 = vector.broadcast %cst_7 : f32 to vector<8x1xf32>
    %23 = arith.maximumf %21, %22 : vector<8x1xf32>
    %cst_8 = arith.constant 0.000000e+00 : f32
    %24 = vector.broadcast %cst_8 : f32 to vector<8x1xf32>
    %25 = arith.subf %24, %23 : vector<8x1xf32>
    %26 = math.exp %25 : vector<8x1xf32>
    %cst_9 = arith.constant 1.000000e+00 : f32
    %27 = vector.broadcast %cst_9 : f32 to vector<8x1xf32>
    %28 = arith.subf %27, %26 : vector<8x1xf32>
    %cst_10 = arith.constant 0.000000e+00 : f32
    %29 = vector.broadcast %cst_10 : f32 to vector<8x1xf32>
    %30 = arith.maximumf %28, %29 : vector<8x1xf32>
    %cst_11 = arith.constant 1.000000e+00 : f32
    %31 = vector.broadcast %cst_11 : f32 to vector<8x1xf32>
    %32 = arith.mulf %31, %30 : vector<8x1xf32>
    %33 = arith.mulf %32, %30 : vector<8x1xf32>
    %34 = arith.mulf %33, %23 : vector<8x1xf32>
    %c1_i32 = arith.constant 1 : i32
    %35 = arith.muli %arg0, %c1_i32 : i32
    %36 = arith.addi %35, %arg1 : i32
    %37 = tpu.iota {dimensions = array<i32: 0>} : vector<8x1xi32>
    %c8_i32 = arith.constant 8 : i32
    %38 = arith.muli %36, %c8_i32 : i32
    %39 = vector.broadcast %38 : i32 to vector<8x1xi32>
    %40 = arith.addi %37, %39 : vector<8x1xi32>
    %c8_i32_12 = arith.constant 8 : i32
    %41 = vector.broadcast %c8_i32_12 : i32 to vector<8x1xi32>
    %42 = arith.cmpi slt, %40, %41 : vector<8x1xi32>
    %cst_13 = arith.constant 0.000000e+00 : f32
    %43 = vector.broadcast %cst_13 : f32 to vector<8x1xf32>
    %44 = arith.select %42, %34, %43 : vector<8x1xi1>, vector<8x1xf32>
    %c0_14 = arith.constant 0 : index
    %c0_15 = arith.constant 0 : index
    %c0_16 = arith.constant 0 : index
    %45 = vector.load %arg4[%c0_14, %c0_15, %c0_16] : memref<1x8x128xf32, #tpu.memory_space<vmem>>, vector<1x8x128xf32>
    %46 = vector.shape_cast %44 : vector<8x1xf32> to vector<1x8x1xf32>
    %cst_17 = arith.constant dense<0.000000e+00> : vector<1xf32>
    %47 = vector.multi_reduction <add>, %46, %cst_17 [1, 2] : vector<1x8x1xf32> to vector<1xf32>
    %48 = vector.shape_cast %47 : vector<1xf32> to vector<1x1x1xf32>
    %49 = vector.extract %48[0, 0, 0] : f32 from vector<1x1x1xf32>
    %50 = vector.broadcast %49 : f32 to vector<1x8x128xf32>
    %51 = arith.addf %45, %50 : vector<1x8x128xf32>
    %c0_18 = arith.constant 0 : index
    %c0_19 = arith.constant 0 : index
    %c0_20 = arith.constant 0 : index
    %52 = vector.load %arg4[%c0_18, %c0_19, %c0_20] : memref<1x8x128xf32, #tpu.memory_space<vmem>>, vector<1x8x128xf32>
    tpu.vector_store %arg4[%c0_18, %c0_19, %c0_20], %51 {strides = array<i32>} : memref<1x8x128xf32, #tpu.memory_space<vmem>>, vector<1x8x128xf32>,
    return
  }
  func.func @transform_0(%arg0: i32, %arg1: i32) -> (i32, i32) {
    %c1_i32 = arith.constant 1 : i32
    %0 = arith.muli %arg0, %c1_i32 : i32
    %1 = arith.addi %0, %arg1 : i32
    %c0_i32 = arith.constant 0 : i32
    %2 = arith.minsi %1, %c0_i32 : i32
    %c0_i32_0 = arith.constant 0 : i32
    %c0_i32_1 = arith.constant 0 : i32
    return %2, %c0_i32_0 : i32, i32
  }
  func.func @transform_1(%arg0: i32, %arg1: i32) -> (i32, i32) {
    %c1_i32 = arith.constant 1 : i32
    %0 = arith.muli %arg0, %c1_i32 : i32
    %1 = arith.addi %0, %arg1 : i32
    %c0_i32 = arith.constant 0 : i32
    %2 = arith.minsi %1, %c0_i32 : i32
    %c0_i32_0 = arith.constant 0 : i32
    %c0_i32_1 = arith.constant 0 : i32
    return %2, %c0_i32_0 : i32, i32
  }
  func.func @transform_2(%arg0: i32, %arg1: i32) -> (i32, i32, i32) {
    %c0_i32 = arith.constant 0 : i32
    %c0_i32_0 = arith.constant 0 : i32
    %c0_i32_1 = arith.constant 0 : i32
    return %arg0, %c0_i32, %c0_i32_0 : i32, i32, i32
  }
}

</mosaic_0001>

<llo_original>
// kernel: tpu_custom_call.1
$region0: #{tpu_custom_call.1}
  #allocation0 [shape = 'u32[]', space=smem, size = 0x4, offset = 0x4, fixed_abs, tag = 'smem constant byte address 0x4 - core index']
  #allocation1 [shape = 'u32[144,128]{1,0:T(1,128)}', space=vmem, size = 0x12000, scoped, tag = 'internal scratch']
  %s0 = inlined_call_operand.vmem [shape: f32[8,32], index: 0, kind: input, shape index: {}]
  %s1 = inlined_call_operand.vmem [shape: s32[8,1], index: 1, kind: input, shape index: {}]
  %s2 = inlined_call_operand.hbm [shape: f32[1,8,128], index: 2, kind: output, shape index: {}]
  %s3 = sld [smem:[#allocation0]]
  $region22: #{tpu_custom_call.1} parent=0
    _
  %s5 = ssub.s32 1, %s3
  %s6 = scalar_select 0, %s5, %s3
  $region1: #{tpu_custom_call.1} parent=0
    #allocation2 [shape = 'u8[4096]{0}', space=vmem, size = 0x1000, scoped, tag = 'output window, operand 0, single buffered']
    #allocation3 [shape = 's32[1]{0}', space=sflag, size = 0x4, scoped, tag = 'scoped memory for tpu_custom_call.1']
    %7 = vsyncpa [#allocation3], 0
    // Predicated region
    $region2: #{tpu_custom_call.1} parent=1 // pred_check
      _
    $region3: #{tpu_custom_call.1} parent=1 // pred_check_branch
      %9 = sbr.rel (0) target = $region5
    $region4: #{tpu_custom_call.1} parent=1 // pred_region
      %s10 = sadd.s32 0, 0
      %p11 = scmp.lt.s32.totalorder %s10, 0
      %s12 = scalar_select %p11, %s10, 0
      %p13 = scmp.lt.s32.totalorder %s12, 0
      %s14 = scalar_select %p13, %s12, 0
      %s15 = smul.addr %s14, 8
      %s16 = scalar_lea.vmem %s0, %s15
      %s17 = sadd.s32 0, 0
      %p18 = scmp.lt.s32.totalorder %s17, 0
      %s19 = scalar_select %p18, %s17, 0
    $region5: #{tpu_custom_call.1} parent=1 // pred_fallthru
      _
    // Predicated region
    $region6: #{tpu_custom_call.1} parent=1 // pred_check
      _
    $region7: #{tpu_custom_call.1} parent=1 // pred_check_branch
      %21 = sbr.rel (0) target = $region9
    $region8: #{tpu_custom_call.1} parent=1 // pred_region
      %s22 = sadd.s32 0, 0
      %p23 = scmp.lt.s32.totalorder %s22, 0
      %s24 = scalar_select %p23, %s22, 0
      %p25 = scmp.lt.s32.totalorder %s24, 0
      %s26 = scalar_select %p25, %s24, 0
      %s27 = smul.addr %s26, 8
      %s28 = scalar_lea.vmem %s1, %s27
      %s29 = sadd.s32 0, 0
      %p30 = scmp.lt.s32.totalorder %s29, 0
      %s31 = scalar_select %p30, %s29, 0
    $region9: #{tpu_custom_call.1} parent=1 // pred_fallthru
      _
    %s32 = sadd.s32 0, 0
    %p33 = scmp.lt.s32.totalorder %s32, 0
    %s34 = scalar_select %p33, %s32, 0
    %p35 = scmp.lt.s32.totalorder %s34, 0
    %s36 = scalar_select %p35, %s34, 0
    %s37 = smul.addr %s36, 8
    %s38 = scalar_lea.vmem %s0, %s37
    %s39 = sadd.s32 0, 0
    %p40 = scmp.lt.s32.totalorder %s39, 0
    %s41 = scalar_select %p40, %s39, 0
    %p42 = scmp.lt.s32.totalorder %s41, 0
    %s43 = scalar_select %p42, %s41, 0
    %s44 = smul.addr %s43, 8
    %s45 = scalar_lea.vmem %s1, %s44
    %s46 = sadd.s32 0, 0
    %p47 = scmp.lt.s32.totalorder %s46, 0
    %s48 = scalar_select %p47, %s46, 0
    %p49 = scmp.lt.s32.totalorder %s48, 0
    %s50 = scalar_select %p49, %s48, 0
    %s51 = smul.addr %s50, 8
    %s52 = scalar_lea.vmem %s0, %s51
    %s53 = sadd.s32 0, 0
    %p54 = scmp.lt.s32.totalorder %s53, 0
    %s55 = scalar_select %p54, %s53, 0
    %s56 = sadd.s32 0, 0
    %p57 = scmp.lt.s32.totalorder %s56, 0
    %s58 = scalar_select %p57, %s56, 0
    %p59 = scmp.lt.s32.totalorder %s58, 0
    %s60 = scalar_select %p59, %s58, 0
    %s61 = smul.addr %s60, 8
    %s62 = scalar_lea.vmem %s1, %s61
    %s63 = sadd.s32 0, 0
    %p64 = scmp.lt.s32.totalorder %s63, 0
    %s65 = scalar_select %p64, %s63, 0
    %p66 = scmp.eq.s32.totalorder 0, 0
    // Predicated region
    $region10: #{tpu_custom_call.1} parent=1 // pred_check
      %p67 = pneg %p66
    $region11: #{tpu_custom_call.1} parent=1 // pred_check_branch
      %69 = sbr.rel (%p67) target = $region13
    $region12: #{tpu_custom_call.1} parent=1 // pred_region
      %70 = vst [vmem:[#allocation2] sm:$0xff] 0.0
    $region13: #{tpu_custom_call.1} parent=1 // pred_fallthru
      _
    %v71 = vld [vmem:[%s52] sm:$0xff]
    %v72 = vld [vmem:[%s62] sm:$0xff]
    %vm73 = vcmask 261120
    %v74 = vsel %vm73, %v71, -inf
    %75 = vmax.xlane.f32.xlu0 %v74
    %v76 = vpop.xlane.xlu0 %75
    %v77 = vsub.f32 %v71, %v76
    %v78 = vmul.f32 %v77, 1.442695
    %v79 = vpow.pop %v78
    %v80 = vsel %vm73, %v79, 0.0
    %81 = vadd.xlane.f32.xlu0 %v80
    %v82 = vpop.xlane.xlu0 %81
    %v83 = vlaneseq
    %v84 = vand.u32 %v83, 127
    %85 = vset.pattern.permute.xlu0 0
    %86 = vperm.xlu0 %85, %v72
    %v87 = vpop.permute.xlu0 %86
    %vm88 = vcmp.eq.s32.totalorder %v84, %v87
    %v89 = vsel %vm88, %v71, 0.0
    %v90 = vsel %vm73, %v89, 0.0
    %91 = vadd.xlane.f32.xlu0 %v90
    %v92 = vpop.xlane.xlu0 %91
    %v93 = vlog2.pop %v82
    %v94 = vmul.f32 %v93, 0.6931472
    %v95 = vadd.f32 %v94, %v76
    %v96 = vsub.f32 %v95, %v92
    %v97 = vmax.f32 %v96, 0.0
    %v98 = vsub.f32 0.0, %v97
    %v99 = vmul.f32 %v98, 1.442695
    %v100 = vpow.pop %v99
    %v101 = vsub.f32 1.0, %v100
    %v102 = vmax.f32 %v101, 0.0
    %v103 = vmul.f32 %v102, %v102
    %v104 = vmul.f32 %v103, %v97
    %s105 = sadd.s32 0, 0
    %v106 = vlaneseq
    %v107 = vshrl.u32 %v106, 7
    %s108 = smul.u32 %s105, 8
    %v109 = vstv %s108
    %v110 = vadd.s32 %v107, %v109
    %vm111 = vcmp.lt.s32.totalorder %v110, 8
    %v112 = vsel %vm111, %v104, 0.0
    %v113 = vld [vmem:[#allocation2] sm:$0xff]
    %vm114 = vcmask 7168
    %v115 = vsel %vm114, %v112, 0.0
    %116 = vadd.xlane.f32.xlu0 %v115
    %v117 = vpop.xlane.xlu0 %116
    %v118 = vrot.slane %v117, 4
    %v119 = vadd.f32 %v117, %v118
    %v120 = vrot.slane %v119, 2
    %v121 = vadd.f32 %v119, %v120
    %v122 = vrot.slane %v121, 1
    %v123 = vadd.f32 %v121, %v122
    %s124 = vtos %v123
    %v125 = vstv %s124
    %v126 = vadd.f32 %v113, %v125
    %127 = vst [vmem:[#allocation2] sm:$0xff] %v126
    // Predicated region
    $region14: #{tpu_custom_call.1} parent=1 // pred_check
      _
    $region15: #{tpu_custom_call.1} parent=1 // pred_check_branch
      %129 = sbr.rel (0) target = $region17
    $region16: #{tpu_custom_call.1} parent=1 // pred_region
      %s131 = ssub.s32 128, 128
      %132 = vsyncadd [#allocation3], %s131
      %s134 = sshll.u32 [#allocation2], 4
      %s135 = int_to_ptr.vmem [resolvable:$true] %s134
      %137 = dma.vmem_to_hbm [thread:$0]  %s135, 128, %s2, [#allocation3]
    $region17: #{tpu_custom_call.1} parent=1 // pred_fallthru
      _
    // Predicated region
    $region18: #{tpu_custom_call.1} parent=1 // pred_check
      _
    $region19: #{tpu_custom_call.1} parent=1 // pred_check_branch
      %139 = sbr.rel (0) target = $region21
    $region20: #{tpu_custom_call.1} parent=1 // pred_region
      %140 = dma.done [#allocation3], 128
    $region21: #{tpu_custom_call.1} parent=1 // pred_fallthru
      _
    %141 = vsyncpa [#allocation3], 1

</llo_original>
